<compile_context>
chip_gen: v6e
topology: v6e:2x2x1
jax: 0.10.0
libtpu: 0.0.40
codegen_flags: <defaults>
</compile_context>

<pallas_src>
import jax
import jax.numpy as jnp
from jax.experimental import pallas as pl
from jax.experimental.pallas import tpu as pltpu


def _proj_kernel(x_ref, w_ref, add_ref, o_ref):
    # x_ref:   (N, P)     patches of one batch element (original dtype)
    # w_ref:   (P, D)     in-major projection weight (matmul dtype; VMEM-resident)
    # add_ref: (N+1, D)   f32 folded add table: row 0 = cls+pos[0], rows 1.. = bias+pos[1:]
    # o_ref:   (N+1, D)   output tokens of one batch element
    x = x_ref[...].astype(w_ref.dtype)
    proj = jnp.dot(x, w_ref[...], preferred_element_type=jnp.float32)   # (N, D) f32
    add = add_ref[...]                                                    # (N+1, D) f32
    o_ref[0:1, :] = add[0:1, :].astype(o_ref.dtype)                       # CLS token row
    o_ref[1:, :] = (proj + add[1:, :]).astype(o_ref.dtype)                # patch token rows


def prepare_params(weight, bias, cls_token, pos_embedding, *,
                   matmul_dtype=jnp.bfloat16):
    """One-time parameter prep (hoisted out of the per-call path).

    weight: (D, P) nn.Linear weight; bias: (D,); cls_token: (1, D);
    pos_embedding: (1, N+1, D).  bf16 matmul inputs are MXU-native on v5e/v6e/v7x;
    pass matmul_dtype=jnp.float32 for a tight-accuracy path.
    """
    D, P = weight.shape
    T = pos_embedding.shape[1]                    # N + 1 tokens (CLS + patches)

    w = weight.T.astype(matmul_dtype)             # (P, D), in-major, unpadded

    # Folded per-token additive table, kept f32: it is VMEM-resident (constant
    # index_map -> DMA'd once), so its dtype costs nothing in bandwidth.
    cls_row = cls_token.astype(jnp.float32) + pos_embedding[:, 0, :].astype(jnp.float32)
    tok_rows = (bias[None, :].astype(jnp.float32)
                + pos_embedding[0, 1:, :].astype(jnp.float32))
    add = jnp.concatenate([cls_row, tok_rows], axis=0)                    # (T, D) f32

    return dict(w=w, add=add, P=P, D=D, T=T, matmul_dtype=matmul_dtype)


def linear_projection(x, params, *, use_pallas=None):
    """x: (B, N, P) -> (B, N+1, D)."""
    B, N, P = x.shape
    T, D = params["T"], params["D"]
    assert T == N + 1 and P == params["P"]
    w, add = params["w"], params["add"]

    if use_pallas is None:
        # Below a few MFLOP the pallas_call fixed overhead dominates -> let XLA fuse it.
        use_pallas = (B * N * P * D) >= (1 << 22)

    if not use_pallas:
        proj = jnp.einsum("bnp,pd->bnd", x.astype(w.dtype), w,
                          preferred_element_type=jnp.float32)
        out = jnp.concatenate(
            [jnp.broadcast_to(add[None, :1, :], (B, 1, D)),
             proj + add[None, 1:, :]], axis=1)
        return out.astype(x.dtype)

    return pl.pallas_call(
        _proj_kernel,
        out_shape=jax.ShapeDtypeStruct((B, T, D), x.dtype),
        grid_spec=pltpu.PrefetchScalarGridSpec(
            num_scalar_prefetch=0,
            grid=(B,),                                            # >= 2 steps for any real B
            in_specs=[
                pl.BlockSpec((None, N, P), lambda b: (b, 0, 0)),  # x[b]: streamed per step
                pl.BlockSpec((P, D), lambda b: (0, 0)),           # weight: VMEM-resident
                pl.BlockSpec((T, D), lambda b: (0, 0)),           # add table: VMEM-resident
            ],
            out_specs=pl.BlockSpec((None, T, D), lambda b: (b, 0, 0)),
        ),
        compiler_params=pltpu.CompilerParams(
            dimension_semantics=("parallel",)),                   # megacore / v7x 2-TC sharding
    )(x, w, add)


def reference(x, weight, bias, cls_token, pos_embedding):
    B = x.shape[0]
    proj = jnp.einsum("bnp,dp->bnd", x, weight) + bias
    cls = jnp.broadcast_to(cls_token[None, :, :], (B, 1, weight.shape[0]))
    return jnp.concatenate([cls, proj], axis=1) + pos_embedding


if __name__ == "__main__":
    # Module hyper-params (small, consistent with the forward pass).
    patch_vec_size = 48
    num_patches = 8
    latent_vec_dim = 32
    batch = 2

    key = jax.random.PRNGKey(0)
    k_x, k_w, k_b, k_cls, k_pos = jax.random.split(key, 5)

    x = jax.random.normal(k_x, (batch, num_patches, patch_vec_size), jnp.float32)
    # nn.Linear(patch_vec_size, latent_vec_dim): weight (D, P), bias (D,)
    weight = jax.random.normal(k_w, (latent_vec_dim, patch_vec_size), jnp.float32) * 0.02
    bias = jax.random.normal(k_b, (latent_vec_dim,), jnp.float32) * 0.02
    cls_token = jax.random.normal(k_cls, (1, latent_vec_dim), jnp.float32)
    pos_embedding = jax.random.normal(
        k_pos, (1, num_patches + 1, latent_vec_dim), jnp.float32)

    ref = reference(x, weight, bias, cls_token, pos_embedding)

    # f32 Pallas path: must match the reference tightly.
    params_f32 = prepare_params(weight, bias, cls_token, pos_embedding,
                                matmul_dtype=jnp.float32)
    out = jax.block_until_ready(linear_projection(x, params_f32, use_pallas=True))
    assert out.shape == (batch, num_patches + 1, latent_vec_dim)
    assert jnp.allclose(out, ref, atol=1e-5, rtol=1e-5), "f32 mismatch vs reference"

    # bf16-MXU fast path (native on v5e/v6e/v7x): bf16 matmul inputs, f32 accumulation
    # and f32 epilogue add.
    params_bf16 = prepare_params(weight, bias, cls_token, pos_embedding,
                                 matmul_dtype=jnp.bfloat16)
    out_bf16 = jax.block_until_ready(linear_projection(x, params_bf16, use_pallas=True))
    assert out_bf16.shape == (batch, num_patches + 1, latent_vec_dim)
    assert jnp.allclose(out_bf16, ref, atol=5e-2, rtol=5e-2), "bf16 mismatch vs reference"

    # Size-gated auto path (demo shapes are tiny -> fused XLA route), for coverage.
    out_auto = jax.block_until_ready(linear_projection(x, params_f32))
    assert jnp.allclose(out_auto, ref, atol=1e-5, rtol=1e-5), "auto-path mismatch"

    print("KERNEL_OK")
</pallas_src>

<mosaic_0001>
module attributes {stable_mosaic.version = 11 : i64} {
  func.func @_proj_kernel(%arg0: i32, %arg1: memref<1x8x48xf32, #tpu.memory_space<vmem>>, %arg2: memref<48x32xf32, #tpu.memory_space<vmem>>, %arg3: memref<9x32xf32, #tpu.memory_space<vmem>>, %arg4: memref<1x9x32xf32, #tpu.memory_space<vmem>>) attributes {dimension_semantics = [#tpu.dimension_semantics<parallel>], iteration_bounds = array<i64: 2>, scalar_prefetch = 0 : i64, scratch_operands = 0 : i64, tpu.core_type = #tpu.core_type<tc>, window_params = [{transform_indices = @transform_0, window_bounds = array<i64: 1, 8, 48>}, {pipeline_mode = #tpu.pipeline_mode<synchronous>, transform_indices = @transform_1, window_bounds = array<i64: 48, 32>}, {pipeline_mode = #tpu.pipeline_mode<synchronous>, transform_indices = @transform_2, window_bounds = array<i64: 9, 32>}, {transform_indices = @transform_3, window_bounds = array<i64: 1, 9, 32>}]} {
    %c0 = arith.constant 0 : index
    %c0_0 = arith.constant 0 : index
    %c0_1 = arith.constant 0 : index
    %0 = vector.load %arg1[%c0, %c0_0, %c0_1] : memref<1x8x48xf32, #tpu.memory_space<vmem>>, vector<1x8x48xf32>
    %1 = vector.shape_cast %0 : vector<1x8x48xf32> to vector<8x48xf32>
    %c0_2 = arith.constant 0 : index
    %c0_3 = arith.constant 0 : index
    %2 = vector.load %arg2[%c0_2, %c0_3] : memref<48x32xf32, #tpu.memory_space<vmem>>, vector<48x32xf32>
    %cst = arith.constant dense<0.000000e+00> : vector<8x32xf32>
    %3 = tpu.matmul %1, %2, %cst {dimension_numbers = #tpu.dot_dimension_numbers<[1], [0], [0], [1], [0, 0, 1, 1], [], []>} : vector<8x48xf32>, vector<48x32xf32>, vector<8x32xf32> -> vector<8x32xf32>
    %c0_4 = arith.constant 0 : index
    %c0_5 = arith.constant 0 : index
    %4 = vector.load %arg3[%c0_4, %c0_5] : memref<9x32xf32, #tpu.memory_space<vmem>>, vector<9x32xf32>
    %5 = vector.extract_strided_slice %4 {offsets = [0, 0], sizes = [1, 32], strides = [1, 1]} : vector<9x32xf32> to vector<1x32xf32>
    %c0_6 = arith.constant 0 : index
    %c0_7 = arith.constant 0 : index
    %c0_8 = arith.constant 0 : index
    %6 = vector.load %arg4[%c0_6, %c0_7, %c0_8] : memref<1x9x32xf32, #tpu.memory_space<vmem>>, vector<1x1x32xf32>
    %7 = vector.shape_cast %6 : vector<1x1x32xf32> to vector<1x32xf32>
    %8 = vector.shape_cast %5 : vector<1x32xf32> to vector<1x1x32xf32>
    tpu.vector_store %arg4[%c0_6, %c0_7, %c0_8], %8 {strides = array<i32>} : memref<1x9x32xf32, #tpu.memory_space<vmem>>, vector<1x1x32xf32>,
    %9 = vector.extract_strided_slice %4 {offsets = [1, 0], sizes = [8, 32], strides = [1, 1]} : vector<9x32xf32> to vector<8x32xf32>
    %10 = arith.addf %3, %9 : vector<8x32xf32>
    %c0_9 = arith.constant 0 : index
    %c1 = arith.constant 1 : index
    %c0_10 = arith.constant 0 : index
    %11 = vector.load %arg4[%c0_9, %c1, %c0_10] : memref<1x9x32xf32, #tpu.memory_space<vmem>>, vector<1x8x32xf32>
    %12 = vector.shape_cast %11 : vector<1x8x32xf32> to vector<8x32xf32>
    %13 = vector.shape_cast %10 : vector<8x32xf32> to vector<1x8x32xf32>
    tpu.vector_store %arg4[%c0_9, %c1, %c0_10], %13 {strides = array<i32>} : memref<1x9x32xf32, #tpu.memory_space<vmem>>, vector<1x8x32xf32>,
    return
  }
  func.func @transform_0(%arg0: i32) -> (i32, i32, i32) {
    %c0_i32 = arith.constant 0 : i32
    %c0_i32_0 = arith.constant 0 : i32
    %c0_i32_1 = arith.constant 0 : i32
    return %arg0, %c0_i32, %c0_i32_0 : i32, i32, i32
  }
  func.func @transform_1(%arg0: i32) -> (i32, i32) {
    %c0_i32 = arith.constant 0 : i32
    %c0_i32_0 = arith.constant 0 : i32
    %c0_i32_1 = arith.constant 0 : i32
    return %c0_i32, %c0_i32_0 : i32, i32
  }
  func.func @transform_2(%arg0: i32) -> (i32, i32) {
    %c0_i32 = arith.constant 0 : i32
    %c0_i32_0 = arith.constant 0 : i32
    %c0_i32_1 = arith.constant 0 : i32
    return %c0_i32, %c0_i32_0 : i32, i32
  }
  func.func @transform_3(%arg0: i32) -> (i32, i32, i32) {
    %c0_i32 = arith.constant 0 : i32
    %c0_i32_0 = arith.constant 0 : i32
    %c0_i32_1 = arith.constant 0 : i32
    return %arg0, %c0_i32, %c0_i32_0 : i32, i32, i32
  }
}

</mosaic_0001>

<llo_original>
// kernel: tpu_custom_call.1
$region0: #{tpu_custom_call.1}
  #allocation0 [shape = 'u32[]', space=smem, size = 0x4, offset = 0x4, fixed_abs, tag = 'smem constant byte address 0x4 - core index']
  #allocation1 [shape = 'u32[144,128]{1,0:T(1,128)}', space=vmem, size = 0x12000, scoped, tag = 'internal scratch']
  %s0 = inlined_call_operand.vmem [shape: f32[2,8,48], index: 0, kind: input, shape index: {}]
  %s1 = inlined_call_operand.vmem [shape: f32[48,32], index: 1, kind: input, shape index: {}]
  %s2 = inlined_call_operand.vmem [shape: f32[9,32], index: 2, kind: input, shape index: {}]
  %s3 = inlined_call_operand.vmem [shape: f32[2,9,32], index: 3, kind: output, shape index: {}]
  %s4 = sld [smem:[#allocation0]]
  $region45: #{tpu_custom_call.1} parent=0
    _
  %s6 = ssub.s32 1, %s4
  %s7 = scalar_select 0, %s6, %s4
  loop: start=0, step=1, limit=4
  $region2: #{tpu_custom_call.1} parent=0 // loop_pre_header
    _
  $region3: #{tpu_custom_call.1} parent=0 // loop_header
    %s9 = sphi 0, %s13
    %p10 = scmp.ge.s32.totalorder %s9, 4
    %s19 = sphi 0, %s21
    %s22 = sphi 0, %s19
    %s23 = sphi 0, %s22
    %s39 = sphi 0, %s23
    %s43 = sphi 0, %s43
    %s45 = sphi 0, %s43
    %s46 = sphi 0, %s45
    %s60 = sphi 0, %s46
    %s64 = sphi 0, %s64
    %s66 = sphi 0, %s64
    %s67 = sphi 0, %s66
    %s81 = sphi 0, %s67
    %s87 = sphi 0, %s89
    %s90 = sphi 0, %s87
    %s91 = sphi 0, %s90
    %s107 = sphi 0, %s91
  $region4: #{tpu_custom_call.1} parent=0 // loop_header_branch
    %12 = sbr.rel (%p10) target = $region8
  $region5: #{tpu_custom_call.1} parent=0 // loop_body
    %s14 = ssub.s32 %s9, 1
    %s15 = ssub.s32 %s9, 2
    %s16 = sadd.s32 %s9, 1
    %s17 = ssub.s32 %s9, %s16
    %p18 = scmp.eq.s32.totalorder %s17, 0
    %s20 = sadd.s32 %s19, 1
    %s21 = scalar_select %p18, %s19, %s20
    %p24 = pneg %p18
    %p25 = scmp.eq.s32.totalorder %s9, 1
    %p26 = por %p24, %p25
    %p27 = scmp.ne.s32.totalorder %s19, %s22
    %p28 = scmp.eq.s32.totalorder %s9, 0
    %p29 = por %p27, %p28
    %p30 = scmp.ne.s32.totalorder %s19, %s22
    %p31 = scmp.eq.s32.totalorder %s14, 1
    %p32 = por %p30, %p31
    %p33 = scmp.ne.s32.totalorder %s22, %s23
    %p34 = scmp.eq.s32.totalorder %s14, 0
    %p35 = por %p33, %p34
    %p36 = scmp.ne.s32.totalorder %s22, %s23
    %p37 = scmp.eq.s32.totalorder %s15, 1
    %p38 = por %p36, %p37
    %p40 = scmp.ne.s32.totalorder %s23, %s39
    %p41 = scmp.eq.s32.totalorder %s15, 0
    %p42 = por %p40, %p41
    %s44 = sadd.s32 %s43, 1
    %p47 = scmp.eq.s32.totalorder %s9, 1
    %p48 = scmp.ne.s32.totalorder %s43, %s45
    %p49 = scmp.eq.s32.totalorder %s9, 0
    %p50 = por %p48, %p49
    %p51 = scmp.ne.s32.totalorder %s43, %s45
    %p52 = scmp.eq.s32.totalorder %s14, 1
    %p53 = por %p51, %p52
    %p54 = scmp.ne.s32.totalorder %s45, %s46
    %p55 = scmp.eq.s32.totalorder %s14, 0
    %p56 = por %p54, %p55
    %p57 = scmp.ne.s32.totalorder %s45, %s46
    %p58 = scmp.eq.s32.totalorder %s15, 1
    %p59 = por %p57, %p58
    %p61 = scmp.ne.s32.totalorder %s46, %s60
    %p62 = scmp.eq.s32.totalorder %s15, 0
    %p63 = por %p61, %p62
    %s65 = sadd.s32 %s64, 1
    %p68 = scmp.eq.s32.totalorder %s9, 1
    %p69 = scmp.ne.s32.totalorder %s64, %s66
    %p70 = scmp.eq.s32.totalorder %s9, 0
    %p71 = por %p69, %p70
    %p72 = scmp.ne.s32.totalorder %s64, %s66
    %p73 = scmp.eq.s32.totalorder %s14, 1
    %p74 = por %p72, %p73
    %p75 = scmp.ne.s32.totalorder %s66, %s67
    %p76 = scmp.eq.s32.totalorder %s14, 0
    %p77 = por %p75, %p76
    %p78 = scmp.ne.s32.totalorder %s66, %s67
    %p79 = scmp.eq.s32.totalorder %s15, 1
    %p80 = por %p78, %p79
    %p82 = scmp.ne.s32.totalorder %s67, %s81
    %p83 = scmp.eq.s32.totalorder %s15, 0
    %p84 = por %p82, %p83
    %s85 = ssub.s32 %s9, %s16
    %p86 = scmp.eq.s32.totalorder %s85, 0
    %s88 = sadd.s32 %s87, 1
    %s89 = scalar_select %p86, %s87, %s88
    %p92 = pneg %p86
    %p93 = scmp.eq.s32.totalorder %s9, 1
    %p94 = por %p92, %p93
    %p95 = scmp.ne.s32.totalorder %s87, %s90
    %p96 = scmp.eq.s32.totalorder %s9, 0
    %p97 = por %p95, %p96
    %p98 = scmp.ne.s32.totalorder %s87, %s90
    %p99 = scmp.eq.s32.totalorder %s14, 1
    %p100 = por %p98, %p99
    %p101 = scmp.ne.s32.totalorder %s90, %s91
    %p102 = scmp.eq.s32.totalorder %s14, 0
    %p103 = por %p101, %p102
    %p104 = scmp.ne.s32.totalorder %s90, %s91
    %p105 = scmp.eq.s32.totalorder %s15, 1
    %p106 = por %p104, %p105
    %p108 = scmp.ne.s32.totalorder %s91, %s107
    %p109 = scmp.eq.s32.totalorder %s15, 0
    %p110 = por %p108, %p109
    %p111 = scmp.le.s32.totalorder 1, %s9
    %p112 = scmp.lt.s32.totalorder %s9, 3
    %p113 = pnand %p111, %p112
    %p114 = pneg %p113
    // Predicated region
    $region9: #{tpu_custom_call.1} parent=5 // pred_check
      _
    $region10: #{tpu_custom_call.1} parent=5 // pred_check_branch
      %116 = sbr.rel (%p113) target = $region12
    $region11: #{tpu_custom_call.1} parent=5 // pred_region
      %s117 = ssub.s32 %s9, 1
      // Predicated region
      $region13: #{tpu_custom_call.1} parent=11 // pred_check
        %p118 = pneg %p56
      $region14: #{tpu_custom_call.1} parent=11 // pred_check_branch
        %120 = sbr.rel (%p118) target = $region16
      $region15: #{tpu_custom_call.1} parent=11 // pred_region
        _
      $region16: #{tpu_custom_call.1} parent=11 // pred_fallthru
        _
      // Predicated region
      $region17: #{tpu_custom_call.1} parent=11 // pred_check
        %p121 = pneg %p77
      $region18: #{tpu_custom_call.1} parent=11 // pred_check_branch
        %123 = sbr.rel (%p121) target = $region20
      $region19: #{tpu_custom_call.1} parent=11 // pred_region
        _
      $region20: #{tpu_custom_call.1} parent=11 // pred_fallthru
        _
    $region12: #{tpu_custom_call.1} parent=5 // pred_fallthru
      _
    %p124 = scmp.lt.s32.totalorder %s9, 2
    // Predicated region
    $region21: #{tpu_custom_call.1} parent=5 // pred_check
      %p125 = pneg %p124
    $region22: #{tpu_custom_call.1} parent=5 // pred_check_branch
      %127 = sbr.rel (%p125) target = $region24
    $region23: #{tpu_custom_call.1} parent=5 // pred_region
      // Predicated region
      $region25: #{tpu_custom_call.1} parent=23 // pred_check
        %p128 = pneg %p29
      $region26: #{tpu_custom_call.1} parent=23 // pred_check_branch
        %130 = sbr.rel (%p128) target = $region28
      $region27: #{tpu_custom_call.1} parent=23 // pred_region
        %p131 = scmp.lt.s32.totalorder %s9, 1
        %s132 = scalar_select %p131, %s9, 1
        %s133 = smul.addr %s132, 8
        %s134 = scalar_lea.vmem %s0, %s133
      $region28: #{tpu_custom_call.1} parent=23 // pred_fallthru
        _
    $region24: #{tpu_custom_call.1} parent=5 // pred_fallthru
      _
    %p135 = scmp.le.s32.totalorder 1, %s9
    %p136 = scmp.lt.s32.totalorder %s9, 3
    %p137 = pnand %p135, %p136
    %p138 = pneg %p137
    // Predicated region
    $region29: #{tpu_custom_call.1} parent=5 // pred_check
      _
    $region30: #{tpu_custom_call.1} parent=5 // pred_check_branch
      %140 = sbr.rel (%p137) target = $region32
    $region31: #{tpu_custom_call.1} parent=5 // pred_region
      %s141 = ssub.s32 %s9, 1
      %p142 = scmp.lt.s32.totalorder %s14, 1
      %s143 = scalar_select %p142, %s14, 1
      %s144 = smul.addr %s143, 8
      %s145 = scalar_lea.vmem %s0, %s144
      %p146 = pneg %p35
      %p147 = pneg %p32
      %p148 = pneg %p56
      %p149 = pneg %p53
      %p150 = pneg %p77
      %p151 = pneg %p74
      %p152 = pneg %p103
      %p153 = pneg %p100
      %p154 = scmp.lt.s32.totalorder %s14, 1
      %s155 = scalar_select %p154, %s14, 1
      %s156 = smul.addr %s155, 2
      %s157 = smul.addr %s156, 8
      %s158 = scalar_lea.vmem %s3, %s157
      %p159 = scmp.lt.s32.totalorder %s14, 1
      %s160 = scalar_select %p159, %s14, 1
      %s161 = smul.addr %s160, 8
      %s162 = scalar_lea.vmem %s0, %s161
      %p163 = scmp.lt.s32.totalorder %s14, 1
      %s164 = scalar_select %p163, %s14, 1
      %s165 = smul.addr %s164, 2
      %s166 = smul.addr %s165, 8
      %s167 = scalar_lea.vmem %s3, %s166
      %v168 = vld [vmem:[%s162] sm:$0xff]
      %v169 = vld [vmem:[%s1] sm:$0xff]
      %v170 = vld [vmem:[%s1 + $0x8] sm:$0xff]
      %v171 = vld [vmem:[%s1 + $0x10] sm:$0xff]
      %v172 = vld [vmem:[%s1 + $0x18] sm:$0xff]
      %v173 = vld [vmem:[%s1 + $0x20] sm:$0xff]
      %v174 = vld [vmem:[%s1 + $0x28] sm:$0xff]
      %v175 = vld [vmem:[%s2] sm:$0xff]
      %v176 = vld [vmem:[%s2 + $0x8] sm:$0x1]
      %vm177 = vcmask 253952
      %178 = vst.msk [vmem:[%s167] sm:$0x1] %vm177, %v175
      %vm181 = vcmask 1046528
      %v182 = vrot.slane %v175, 1
      %v183 = vrot.slane %v176, 1
      %v184 = vsel %vm181, %v182, %v183
      %vm186 = vcmask 392192
      %v188 = vsel %vm186, %v168, 0
      %190 = vmatprep.subr.mxu0 0.0
      %191 = vmatpush1.msra.mxu0 0.0
      %192 = vmatprep.subr.mxu0 0.0
      %193 = vmatpush1.msra.mxu0 0.0
      %194 = vmatprep.subr.mxu0 0.0
      %195 = vmatpush1.msra.mxu0 0.0
      %196 = vmatprep.subr.mxu0 0.0
      %197 = vmatpush1.msra.mxu0 0.0
      %198 = vmatprep.subr.mxu0 0.0
      %199 = vmatpush1.msra.mxu0 0.0
      %200 = vmatprep.subr.mxu0 0.0
      %201 = vmatpush1.msra.mxu0 0.0
      %202 = vmatprep.subr.mxu0 0.0
      %203 = vmatpush1.msra.mxu0 0.0
      %204 = vmatprep.subr.mxu0 0.0
      %205 = vmatpush1.msra.mxu0 0.0
      %206 = vmatprep.subr.mxu0 0.0
      %207 = vmatpush1.msra.mxu0 0.0
      %208 = vmatprep.subr.mxu0 0.0
      %209 = vmatpush1.msra.mxu0 0.0
      %210 = vmatprep.subr.mxu0 0.0
      %211 = vmatpush1.msra.mxu0 %v174
      %212 = vmatprep.subr.mxu0 0.0
      %213 = vmatpush1.msra.mxu0 %v173
      %214 = vmatprep.subr.mxu0 0.0
      %215 = vmatpush1.msra.mxu0 %v172
      %216 = vmatprep.subr.mxu0 0.0
      %217 = vmatpush1.msra.mxu0 %v171
      %218 = vmatprep.subr.mxu0 0.0
      %219 = vmatpush1.msra.mxu0 %v170
      %220 = vmatprep.subr.mxu0 0.0
      %221 = vmatpush1.msra.mxu0 %v169
      %222 = vmatprep.subr.mxu0 0.0
      %223 = vmatpush2.msra.mxu0 0.0
      %224 = vmatprep.subr.mxu0 0.0
      %225 = vmatpush2.msra.mxu0 0.0
      %226 = vmatprep.subr.mxu0 0.0
      %227 = vmatpush2.msra.mxu0 0.0
      %228 = vmatprep.subr.mxu0 0.0
      %229 = vmatpush2.msra.mxu0 0.0
      %230 = vmatprep.subr.mxu0 0.0
      %231 = vmatpush2.msra.mxu0 0.0
      %232 = vmatprep.subr.mxu0 0.0
      %233 = vmatpush2.msra.mxu0 0.0
      %234 = vmatprep.subr.mxu0 0.0
      %235 = vmatpush2.msra.mxu0 0.0
      %236 = vmatprep.subr.mxu0 0.0
      %237 = vmatpush2.msra.mxu0 0.0
      %238 = vmatprep.subr.mxu0 0.0
      %239 = vmatpush2.msra.mxu0 0.0
      %240 = vmatprep.subr.mxu0 0.0
      %241 = vmatpush2.msra.mxu0 0.0
      %242 = vmatprep.subr.mxu0 0.0
      %243 = vmatpush2.msra.mxu0 0.0
      %244 = vmatprep.subr.mxu0 0.0
      %245 = vmatpush2.msra.mxu0 0.0
      %246 = vmatprep.subr.mxu0 0.0
      %247 = vmatpush2.msra.mxu0 0.0
      %248 = vmatprep.subr.mxu0 0.0
      %249 = vmatpush2.msra.mxu0 0.0
      %250 = vmatprep.subr.mxu0 0.0
      %251 = vmatpush2.msra.mxu0 0.0
      %252 = vmatprep.subr.mxu0 0.0
      %253 = vmatpush2.msra.mxu0 0.0
      %254 = vmatprep.mubr.f32.mxu0 0.0
      %255 = vmatmul.mubr.f32.gmra.mxu0 %v188
      %v256 = vpop.f32.mrf.mxu0
      %v257 = vadd.f32 %v184, %v256
      %v258 = vpop.f32.mrf.mxu0
      %259 = vdwg.mxu0
      %vm260 = vcmask 261120
      %261 = vst.msk [vmem:[%s167 + $0x1] sm:$0xff] %vm260, %v257
      %p262 = scmp.lt.s32.totalorder %s14, 1
      %s263 = scalar_select %p262, %s14, 1
      %s264 = smul.addr %s263, 2
      %s265 = smul.addr %s264, 8
      %s266 = scalar_lea.vmem %s3, %s265
      // Predicated region
      $region33: #{tpu_custom_call.1} parent=31 // pred_check
        %p267 = pneg %p100
      $region34: #{tpu_custom_call.1} parent=31 // pred_check_branch
        %269 = sbr.rel (%p267) target = $region36
      $region35: #{tpu_custom_call.1} parent=31 // pred_region
        _
      $region36: #{tpu_custom_call.1} parent=31 // pred_fallthru
        _
    $region32: #{tpu_custom_call.1} parent=5 // pred_fallthru
      _
    %p270 = scmp.le.s32.totalorder 2, %s9
    // Predicated region
    $region37: #{tpu_custom_call.1} parent=5 // pred_check
      %p271 = pneg %p270
    $region38: #{tpu_custom_call.1} parent=5 // pred_check_branch
      %273 = sbr.rel (%p271) target = $region40
    $region39: #{tpu_custom_call.1} parent=5 // pred_region
      %s274 = ssub.s32 %s9, 2
      // Predicated region
      $region41: #{tpu_custom_call.1} parent=39 // pred_check
        %p275 = pneg %p106
      $region42: #{tpu_custom_call.1} parent=39 // pred_check_branch
        %277 = sbr.rel (%p275) target = $region44
      $region43: #{tpu_custom_call.1} parent=39 // pred_region
        %p278 = scmp.lt.s32.totalorder %s15, 1
        %s279 = scalar_select %p278, %s15, 1
        %s280 = smul.addr %s279, 2
        %s281 = smul.addr %s280, 8
        %s282 = scalar_lea.vmem %s3, %s281
      $region44: #{tpu_custom_call.1} parent=39 // pred_fallthru
        _
    $region40: #{tpu_custom_call.1} parent=5 // pred_fallthru
      _
  $region6: #{tpu_custom_call.1} parent=0 // loop_footer
    %s13 = sadd.s32 1, %s9
  $region7: #{tpu_custom_call.1} parent=0 // loop_footer_branch
    %8 = sbr.rel target = $region3
  $region8: #{tpu_custom_call.1} parent=0 // loop_exit
    _

</llo_original>
